<compile_context>
chip_gen: v7x
topology: tpu7x:2x2x1
jax: 0.10.0
libtpu: 0.0.40
codegen_flags: <defaults>
</compile_context>

<pallas_src>
import jax
import jax.numpy as jnp
from jax import lax
from jax.experimental import pallas as pl
from jax.experimental.pallas import tpu as pltpu


def lstm_last_hidden_kernel(x_ref, wih_ref, whh_ref, b_ref, out_ref, pre_ref):
    """LSTM recurrence over the full sequence; writes the final hidden state.

    x_ref:   (S*B, E)   time-major flattened embedded question (row = t*B + b)
    wih_ref: (E, 4H)    input projection (torch weight_ih_l0.T)
    whh_ref: (H, 4H)    recurrent projection (torch weight_hh_l0.T)
    b_ref:   (1, 4H)    combined b_ih + b_hh
    out_ref: (B, H)     final hidden state h_T
    pre_ref: (S*B, 4H)  VMEM scratch holding the hoisted input pre-gates
    """
    SB, _ = x_ref.shape
    B, H = out_ref.shape
    S = SB // B

    # (1) Hoisted input projection: one large, well-utilized MXU matmul for all
    #     timesteps instead of S tiny matmuls on the serial critical path.
    pre_ref[...] = (
        jnp.dot(x_ref[...], wih_ref[...], preferred_element_type=jnp.float32)
        + b_ref[...]
    )

    # Hoist the recurrent weight load out of the loop.
    w_hh = whh_ref[...]

    # (2) State carried in vregs through the loop carry (no scratch round-trip).
    def step(t, carry):
        h, c = carry
        g_pre = pre_ref[pl.ds(t * B, B), :]                  # (B, 4H)
        gates = g_pre + jnp.dot(h, w_hh, preferred_element_type=jnp.float32)
        # Gate order [i, f, g, o]; at H=32 these are sub-vreg lane slices (cheap
        # here); at real H keep 4H a multiple of 128 so slabs stay lane-aligned.
        i_g = jax.nn.sigmoid(gates[:, 0 * H:1 * H])
        f_g = jax.nn.sigmoid(gates[:, 1 * H:2 * H])
        g_g = jnp.tanh(gates[:, 2 * H:3 * H])
        o_g = jax.nn.sigmoid(gates[:, 3 * H:4 * H])
        c_new = f_g * c + i_g * g_g
        h_new = o_g * jnp.tanh(c_new)
        return (h_new, c_new)

    h0 = jnp.zeros((B, H), jnp.float32)
    c0 = jnp.zeros((B, H), jnp.float32)
    # (3) Fully unroll the short, static-trip-count recurrence.
    h_final, _ = lax.fori_loop(0, S, step, (h0, c0), unroll=True)
    out_ref[...] = h_final.astype(out_ref.dtype)


def init_params(key, in_size, embed, hidden):
    """Deterministic synthetic parameters matching the nn.Module's shapes."""
    k1, k2, k3, k4, k5 = jax.random.split(key, 5)
    bound = 1.0 / (hidden ** 0.5)
    embedding = jax.random.normal(k1, (in_size + 1, embed), jnp.float32)
    w_ih = jax.random.uniform(k2, (embed, 4 * hidden), jnp.float32, -bound, bound)
    w_hh = jax.random.uniform(k3, (hidden, 4 * hidden), jnp.float32, -bound, bound)
    b_ih = jax.random.uniform(k4, (4 * hidden,), jnp.float32, -bound, bound)
    b_hh = jax.random.uniform(k5, (4 * hidden,), jnp.float32, -bound, bound)
    bias = (b_ih + b_hh).reshape(1, 4 * hidden)
    return dict(embedding=embedding, w_ih=w_ih, w_hh=w_hh, bias=bias)


def question_embed_forward(question, params):
    """Pallas-backed equivalent of QuestionEmbedModel.forward."""
    B, S = question.shape
    H = params["w_hh"].shape[0]
    E = params["embedding"].shape[1]

    # Glue: embedding lookup (gather) in plain JAX, gathered directly into
    # time-major flattened order (row = t*B + b) — no separate activation
    # transpose pass over HBM.
    # TODO(synk): lstm.flatten_parameters() is a CUDA memory-layout hint; no-op here.
    idx = jnp.transpose(question).reshape(-1)                       # (S*B,)
    x = jnp.take(params["embedding"], idx, axis=0).astype(jnp.float32)  # (S*B, E)

    return pl.pallas_call(
        lstm_last_hidden_kernel,
        out_shape=jax.ShapeDtypeStruct((B, H), jnp.float32),
        in_specs=[pl.BlockSpec(memory_space=pltpu.MemorySpace.VMEM)] * 4,
        out_specs=pl.BlockSpec(memory_space=pltpu.MemorySpace.VMEM),
        scratch_shapes=[
            pltpu.VMEM((S * B, 4 * H), jnp.float32),   # hoisted pre-gates
        ],
    )(x, params["w_ih"], params["w_hh"], params["bias"])


def reference_forward(question, params):
    """Pure-JAX reference (PyTorch LSTM semantics) for a correctness check."""
    wembed = jnp.take(params["embedding"], question, axis=0)
    B = question.shape[0]
    H = params["w_hh"].shape[0]

    def step(carry, x_t):
        h, c = carry
        gates = x_t @ params["w_ih"] + h @ params["w_hh"] + params["bias"]
        i = jax.nn.sigmoid(gates[:, 0 * H:1 * H])
        f = jax.nn.sigmoid(gates[:, 1 * H:2 * H])
        g = jnp.tanh(gates[:, 2 * H:3 * H])
        o = jax.nn.sigmoid(gates[:, 3 * H:4 * H])
        c = f * c + i * g
        h = o * jnp.tanh(c)
        return (h, c), None

    h0 = jnp.zeros((B, H), jnp.float32)
    c0 = jnp.zeros((B, H), jnp.float32)
    (h_final, _), _ = lax.scan(step, (h0, c0), jnp.transpose(wembed, (1, 0, 2)))
    return h_final


if __name__ == "__main__":
    in_size, embed, hidden = 20, 32, 32   # small shapes consistent with the module
    B, S = 2, 8

    key = jax.random.PRNGKey(0)
    kq, kp = jax.random.split(key)
    question = jax.random.randint(kq, (B, S), 0, in_size + 1, dtype=jnp.int32)
    params = init_params(kp, in_size, embed, hidden)

    out = question_embed_forward(question, params)
    out = jax.block_until_ready(out)

    ref = reference_forward(question, params)
    assert out.shape == (B, hidden), out.shape
    assert jnp.allclose(out, ref, atol=1e-4, rtol=1e-4), "mismatch vs pure-JAX reference"

    print("KERNEL_OK")
</pallas_src>

<mosaic_0001>
module attributes {stable_mosaic.version = 11 : i64} {
  func.func @lstm_last_hidden_kernel(%arg0: memref<16x32xf32, #tpu.memory_space<vmem>>, %arg1: memref<32x128xf32, #tpu.memory_space<vmem>>, %arg2: memref<32x128xf32, #tpu.memory_space<vmem>>, %arg3: memref<1x128xf32, #tpu.memory_space<vmem>>, %arg4: memref<2x32xf32, #tpu.memory_space<vmem>>, %arg5: memref<16x128xf32, #tpu.memory_space<vmem>>) attributes {dimension_semantics = [], scalar_prefetch = 0 : i64, scratch_operands = 1 : i64, tpu.core_type = #tpu.core_type<tc>} {
    %c0 = arith.constant 0 : index
    %c0_0 = arith.constant 0 : index
    %0 = vector.load %arg0[%c0, %c0_0] : memref<16x32xf32, #tpu.memory_space<vmem>>, vector<16x32xf32>
    %c0_1 = arith.constant 0 : index
    %c0_2 = arith.constant 0 : index
    %1 = vector.load %arg1[%c0_1, %c0_2] : memref<32x128xf32, #tpu.memory_space<vmem>>, vector<32x128xf32>
    %cst = arith.constant dense<0.000000e+00> : vector<16x128xf32>
    %2 = tpu.matmul %0, %1, %cst {dimension_numbers = #tpu.dot_dimension_numbers<[1], [0], [0], [1], [0, 0, 1, 1], [], []>} : vector<16x32xf32>, vector<32x128xf32>, vector<16x128xf32> -> vector<16x128xf32>
    %c0_3 = arith.constant 0 : index
    %c0_4 = arith.constant 0 : index
    %3 = vector.load %arg3[%c0_3, %c0_4] : memref<1x128xf32, #tpu.memory_space<vmem>>, vector<1x128xf32>
    %4 = vector.broadcast %3 : vector<1x128xf32> to vector<16x128xf32>
    %5 = arith.addf %2, %4 : vector<16x128xf32>
    %c0_5 = arith.constant 0 : index
    %c0_6 = arith.constant 0 : index
    %6 = vector.load %arg5[%c0_5, %c0_6] : memref<16x128xf32, #tpu.memory_space<vmem>>, vector<16x128xf32>
    tpu.vector_store %arg5[%c0_5, %c0_6], %5 {strides = array<i32>} : memref<16x128xf32, #tpu.memory_space<vmem>>, vector<16x128xf32>,
    %c0_7 = arith.constant 0 : index
    %c0_8 = arith.constant 0 : index
    %7 = vector.load %arg2[%c0_7, %c0_8] : memref<32x128xf32, #tpu.memory_space<vmem>>, vector<32x128xf32>
    %cst_9 = arith.constant 0.000000e+00 : f32
    %8 = vector.broadcast %cst_9 : f32 to vector<2x32xf32>
    %cst_10 = arith.constant 0.000000e+00 : f32
    %9 = vector.broadcast %cst_10 : f32 to vector<2x32xf32>
    %c0_i32 = arith.constant 0 : i32
    %c2_i32 = arith.constant 2 : i32
    %10 = arith.muli %c0_i32, %c2_i32 : i32
    %11 = arith.index_cast %10 : i32 to index
    %c0_11 = arith.constant 0 : index
    %12 = vector.load %arg5[%11, %c0_11] : memref<16x128xf32, #tpu.memory_space<vmem>>, vector<2x128xf32>
    %cst_12 = arith.constant dense<0.000000e+00> : vector<2x128xf32>
    %13 = tpu.matmul %8, %7, %cst_12 {dimension_numbers = #tpu.dot_dimension_numbers<[1], [0], [0], [1], [0, 0, 1, 1], [], []>} : vector<2x32xf32>, vector<32x128xf32>, vector<2x128xf32> -> vector<2x128xf32>
    %14 = arith.addf %12, %13 : vector<2x128xf32>
    %15 = vector.extract_strided_slice %14 {offsets = [0, 0], sizes = [2, 32], strides = [1, 1]} : vector<2x128xf32> to vector<2x32xf32>
    %16 = arith.negf %15 : vector<2x32xf32>
    %17 = math.exp %16 : vector<2x32xf32>
    %cst_13 = arith.constant 1.000000e+00 : f32
    %18 = vector.broadcast %cst_13 : f32 to vector<2x32xf32>
    %19 = arith.addf %18, %17 : vector<2x32xf32>
    %20 = arith.divf %18, %19 : vector<2x32xf32>
    %21 = vector.extract_strided_slice %14 {offsets = [0, 32], sizes = [2, 32], strides = [1, 1]} : vector<2x128xf32> to vector<2x32xf32>
    %22 = arith.negf %21 : vector<2x32xf32>
    %23 = math.exp %22 : vector<2x32xf32>
    %cst_14 = arith.constant 1.000000e+00 : f32
    %24 = vector.broadcast %cst_14 : f32 to vector<2x32xf32>
    %25 = arith.addf %24, %23 : vector<2x32xf32>
    %26 = arith.divf %24, %25 : vector<2x32xf32>
    %27 = vector.extract_strided_slice %14 {offsets = [0, 64], sizes = [2, 32], strides = [1, 1]} : vector<2x128xf32> to vector<2x32xf32>
    %28 = math.tanh %27 : vector<2x32xf32>
    %29 = vector.extract_strided_slice %14 {offsets = [0, 96], sizes = [2, 32], strides = [1, 1]} : vector<2x128xf32> to vector<2x32xf32>
    %30 = arith.negf %29 : vector<2x32xf32>
    %31 = math.exp %30 : vector<2x32xf32>
    %cst_15 = arith.constant 1.000000e+00 : f32
    %32 = vector.broadcast %cst_15 : f32 to vector<2x32xf32>
    %33 = arith.addf %32, %31 : vector<2x32xf32>
    %34 = arith.divf %32, %33 : vector<2x32xf32>
    %35 = arith.mulf %26, %9 : vector<2x32xf32>
    %36 = arith.mulf %20, %28 : vector<2x32xf32>
    %37 = arith.addf %35, %36 : vector<2x32xf32>
    %38 = math.tanh %37 : vector<2x32xf32>
    %39 = arith.mulf %34, %38 : vector<2x32xf32>
    %c1_i32 = arith.constant 1 : i32
    %c2_i32_16 = arith.constant 2 : i32
    %40 = arith.muli %c1_i32, %c2_i32_16 : i32
    %41 = arith.index_cast %40 : i32 to index
    %c0_17 = arith.constant 0 : index
    %42 = vector.load %arg5[%41, %c0_17] : memref<16x128xf32, #tpu.memory_space<vmem>>, vector<2x128xf32>
    %cst_18 = arith.constant dense<0.000000e+00> : vector<2x128xf32>
    %43 = tpu.matmul %39, %7, %cst_18 {dimension_numbers = #tpu.dot_dimension_numbers<[1], [0], [0], [1], [0, 0, 1, 1], [], []>} : vector<2x32xf32>, vector<32x128xf32>, vector<2x128xf32> -> vector<2x128xf32>
    %44 = arith.addf %42, %43 : vector<2x128xf32>
    %45 = vector.extract_strided_slice %44 {offsets = [0, 0], sizes = [2, 32], strides = [1, 1]} : vector<2x128xf32> to vector<2x32xf32>
    %46 = arith.negf %45 : vector<2x32xf32>
    %47 = math.exp %46 : vector<2x32xf32>
    %cst_19 = arith.constant 1.000000e+00 : f32
    %48 = vector.broadcast %cst_19 : f32 to vector<2x32xf32>
    %49 = arith.addf %48, %47 : vector<2x32xf32>
    %50 = arith.divf %48, %49 : vector<2x32xf32>
    %51 = vector.extract_strided_slice %44 {offsets = [0, 32], sizes = [2, 32], strides = [1, 1]} : vector<2x128xf32> to vector<2x32xf32>
    %52 = arith.negf %51 : vector<2x32xf32>
    %53 = math.exp %52 : vector<2x32xf32>
    %cst_20 = arith.constant 1.000000e+00 : f32
    %54 = vector.broadcast %cst_20 : f32 to vector<2x32xf32>
    %55 = arith.addf %54, %53 : vector<2x32xf32>
    %56 = arith.divf %54, %55 : vector<2x32xf32>
    %57 = vector.extract_strided_slice %44 {offsets = [0, 64], sizes = [2, 32], strides = [1, 1]} : vector<2x128xf32> to vector<2x32xf32>
    %58 = math.tanh %57 : vector<2x32xf32>
    %59 = vector.extract_strided_slice %44 {offsets = [0, 96], sizes = [2, 32], strides = [1, 1]} : vector<2x128xf32> to vector<2x32xf32>
    %60 = arith.negf %59 : vector<2x32xf32>
    %61 = math.exp %60 : vector<2x32xf32>
    %cst_21 = arith.constant 1.000000e+00 : f32
    %62 = vector.broadcast %cst_21 : f32 to vector<2x32xf32>
    %63 = arith.addf %62, %61 : vector<2x32xf32>
    %64 = arith.divf %62, %63 : vector<2x32xf32>
    %65 = arith.mulf %56, %37 : vector<2x32xf32>
    %66 = arith.mulf %50, %58 : vector<2x32xf32>
    %67 = arith.addf %65, %66 : vector<2x32xf32>
    %68 = math.tanh %67 : vector<2x32xf32>
    %69 = arith.mulf %64, %68 : vector<2x32xf32>
    %c2_i32_22 = arith.constant 2 : i32
    %c2_i32_23 = arith.constant 2 : i32
    %70 = arith.muli %c2_i32_22, %c2_i32_23 : i32
    %71 = arith.index_cast %70 : i32 to index
    %c0_24 = arith.constant 0 : index
    %72 = vector.load %arg5[%71, %c0_24] : memref<16x128xf32, #tpu.memory_space<vmem>>, vector<2x128xf32>
    %cst_25 = arith.constant dense<0.000000e+00> : vector<2x128xf32>
    %73 = tpu.matmul %69, %7, %cst_25 {dimension_numbers = #tpu.dot_dimension_numbers<[1], [0], [0], [1], [0, 0, 1, 1], [], []>} : vector<2x32xf32>, vector<32x128xf32>, vector<2x128xf32> -> vector<2x128xf32>
    %74 = arith.addf %72, %73 : vector<2x128xf32>
    %75 = vector.extract_strided_slice %74 {offsets = [0, 0], sizes = [2, 32], strides = [1, 1]} : vector<2x128xf32> to vector<2x32xf32>
    %76 = arith.negf %75 : vector<2x32xf32>
    %77 = math.exp %76 : vector<2x32xf32>
    %cst_26 = arith.constant 1.000000e+00 : f32
    %78 = vector.broadcast %cst_26 : f32 to vector<2x32xf32>
    %79 = arith.addf %78, %77 : vector<2x32xf32>
    %80 = arith.divf %78, %79 : vector<2x32xf32>
    %81 = vector.extract_strided_slice %74 {offsets = [0, 32], sizes = [2, 32], strides = [1, 1]} : vector<2x128xf32> to vector<2x32xf32>
    %82 = arith.negf %81 : vector<2x32xf32>
    %83 = math.exp %82 : vector<2x32xf32>
    %cst_27 = arith.constant 1.000000e+00 : f32
    %84 = vector.broadcast %cst_27 : f32 to vector<2x32xf32>
    %85 = arith.addf %84, %83 : vector<2x32xf32>
    %86 = arith.divf %84, %85 : vector<2x32xf32>
    %87 = vector.extract_strided_slice %74 {offsets = [0, 64], sizes = [2, 32], strides = [1, 1]} : vector<2x128xf32> to vector<2x32xf32>
    %88 = math.tanh %87 : vector<2x32xf32>
    %89 = vector.extract_strided_slice %74 {offsets = [0, 96], sizes = [2, 32], strides = [1, 1]} : vector<2x128xf32> to vector<2x32xf32>
    %90 = arith.negf %89 : vector<2x32xf32>
    %91 = math.exp %90 : vector<2x32xf32>
    %cst_28 = arith.constant 1.000000e+00 : f32
    %92 = vector.broadcast %cst_28 : f32 to vector<2x32xf32>
    %93 = arith.addf %92, %91 : vector<2x32xf32>
    %94 = arith.divf %92, %93 : vector<2x32xf32>
    %95 = arith.mulf %86, %67 : vector<2x32xf32>
    %96 = arith.mulf %80, %88 : vector<2x32xf32>
    %97 = arith.addf %95, %96 : vector<2x32xf32>
    %98 = math.tanh %97 : vector<2x32xf32>
    %99 = arith.mulf %94, %98 : vector<2x32xf32>
    %c3_i32 = arith.constant 3 : i32
    %c2_i32_29 = arith.constant 2 : i32
    %100 = arith.muli %c3_i32, %c2_i32_29 : i32
    %101 = arith.index_cast %100 : i32 to index
    %c0_30 = arith.constant 0 : index
    %102 = vector.load %arg5[%101, %c0_30] : memref<16x128xf32, #tpu.memory_space<vmem>>, vector<2x128xf32>
    %cst_31 = arith.constant dense<0.000000e+00> : vector<2x128xf32>
    %103 = tpu.matmul %99, %7, %cst_31 {dimension_numbers = #tpu.dot_dimension_numbers<[1], [0], [0], [1], [0, 0, 1, 1], [], []>} : vector<2x32xf32>, vector<32x128xf32>, vector<2x128xf32> -> vector<2x128xf32>
    %104 = arith.addf %102, %103 : vector<2x128xf32>
    %105 = vector.extract_strided_slice %104 {offsets = [0, 0], sizes = [2, 32], strides = [1, 1]} : vector<2x128xf32> to vector<2x32xf32>
    %106 = arith.negf %105 : vector<2x32xf32>
    %107 = math.exp %106 : vector<2x32xf32>
    %cst_32 = arith.constant 1.000000e+00 : f32
    %108 = vector.broadcast %cst_32 : f32 to vector<2x32xf32>
    %109 = arith.addf %108, %107 : vector<2x32xf32>
    %110 = arith.divf %108, %109 : vector<2x32xf32>
    %111 = vector.extract_strided_slice %104 {offsets = [0, 32], sizes = [2, 32], strides = [1, 1]} : vector<2x128xf32> to vector<2x32xf32>
    %112 = arith.negf %111 : vector<2x32xf32>
    %113 = math.exp %112 : vector<2x32xf32>
    %cst_33 = arith.constant 1.000000e+00 : f32
    %114 = vector.broadcast %cst_33 : f32 to vector<2x32xf32>
    %115 = arith.addf %114, %113 : vector<2x32xf32>
    %116 = arith.divf %114, %115 : vector<2x32xf32>
    %117 = vector.extract_strided_slice %104 {offsets = [0, 64], sizes = [2, 32], strides = [1, 1]} : vector<2x128xf32> to vector<2x32xf32>
    %118 = math.tanh %117 : vector<2x32xf32>
    %119 = vector.extract_strided_slice %104 {offsets = [0, 96], sizes = [2, 32], strides = [1, 1]} : vector<2x128xf32> to vector<2x32xf32>
    %120 = arith.negf %119 : vector<2x32xf32>
    %121 = math.exp %120 : vector<2x32xf32>
    %cst_34 = arith.constant 1.000000e+00 : f32
    %122 = vector.broadcast %cst_34 : f32 to vector<2x32xf32>
    %123 = arith.addf %122, %121 : vector<2x32xf32>
    %124 = arith.divf %122, %123 : vector<2x32xf32>
    %125 = arith.mulf %116, %97 : vector<2x32xf32>
    %126 = arith.mulf %110, %118 : vector<2x32xf32>
    %127 = arith.addf %125, %126 : vector<2x32xf32>
    %128 = math.tanh %127 : vector<2x32xf32>
    %129 = arith.mulf %124, %128 : vector<2x32xf32>
    %c4_i32 = arith.constant 4 : i32
    %c2_i32_35 = arith.constant 2 : i32
    %130 = arith.muli %c4_i32, %c2_i32_35 : i32
    %131 = arith.index_cast %130 : i32 to index
    %c0_36 = arith.constant 0 : index
    %132 = vector.load %arg5[%131, %c0_36] : memref<16x128xf32, #tpu.memory_space<vmem>>, vector<2x128xf32>
    %cst_37 = arith.constant dense<0.000000e+00> : vector<2x128xf32>
    %133 = tpu.matmul %129, %7, %cst_37 {dimension_numbers = #tpu.dot_dimension_numbers<[1], [0], [0], [1], [0, 0, 1, 1], [], []>} : vector<2x32xf32>, vector<32x128xf32>, vector<2x128xf32> -> vector<2x128xf32>
    %134 = arith.addf %132, %133 : vector<2x128xf32>
    %135 = vector.extract_strided_slice %134 {offsets = [0, 0], sizes = [2, 32], strides = [1, 1]} : vector<2x128xf32> to vector<2x32xf32>
    %136 = arith.negf %135 : vector<2x32xf32>
    %137 = math.exp %136 : vector<2x32xf32>
    %cst_38 = arith.constant 1.000000e+00 : f32
    %138 = vector.broadcast %cst_38 : f32 to vector<2x32xf32>
    %139 = arith.addf %138, %137 : vector<2x32xf32>
    %140 = arith.divf %138, %139 : vector<2x32xf32>
    %141 = vector.extract_strided_slice %134 {offsets = [0, 32], sizes = [2, 32], strides = [1, 1]} : vector<2x128xf32> to vector<2x32xf32>
    %142 = arith.negf %141 : vector<2x32xf32>
    %143 = math.exp %142 : vector<2x32xf32>
    %cst_39 = arith.constant 1.000000e+00 : f32
    %144 = vector.broadcast %cst_39 : f32 to vector<2x32xf32>
    %145 = arith.addf %144, %143 : vector<2x32xf32>
    %146 = arith.divf %144, %145 : vector<2x32xf32>
    %147 = vector.extract_strided_slice %134 {offsets = [0, 64], sizes = [2, 32], strides = [1, 1]} : vector<2x128xf32> to vector<2x32xf32>
    %148 = math.tanh %147 : vector<2x32xf32>
    %149 = vector.extract_strided_slice %134 {offsets = [0, 96], sizes = [2, 32], strides = [1, 1]} : vector<2x128xf32> to vector<2x32xf32>
    %150 = arith.negf %149 : vector<2x32xf32>
    %151 = math.exp %150 : vector<2x32xf32>
    %cst_40 = arith.constant 1.000000e+00 : f32
    %152 = vector.broadcast %cst_40 : f32 to vector<2x32xf32>
    %153 = arith.addf %152, %151 : vector<2x32xf32>
    %154 = arith.divf %152, %153 : vector<2x32xf32>
    %155 = arith.mulf %146, %127 : vector<2x32xf32>
    %156 = arith.mulf %140, %148 : vector<2x32xf32>
    %157 = arith.addf %155, %156 : vector<2x32xf32>
    %158 = math.tanh %157 : vector<2x32xf32>
    %159 = arith.mulf %154, %158 : vector<2x32xf32>
    %c5_i32 = arith.constant 5 : i32
    %c2_i32_41 = arith.constant 2 : i32
    %160 = arith.muli %c5_i32, %c2_i32_41 : i32
    %161 = arith.index_cast %160 : i32 to index
    %c0_42 = arith.constant 0 : index
    %162 = vector.load %arg5[%161, %c0_42] : memref<16x128xf32, #tpu.memory_space<vmem>>, vector<2x128xf32>
    %cst_43 = arith.constant dense<0.000000e+00> : vector<2x128xf32>
    %163 = tpu.matmul %159, %7, %cst_43 {dimension_numbers = #tpu.dot_dimension_numbers<[1], [0], [0], [1], [0, 0, 1, 1], [], []>} : vector<2x32xf32>, vector<32x128xf32>, vector<2x128xf32> -> vector<2x128xf32>
    %164 = arith.addf %162, %163 : vector<2x128xf32>
    %165 = vector.extract_strided_slice %164 {offsets = [0, 0], sizes = [2, 32], strides = [1, 1]} : vector<2x128xf32> to vector<2x32xf32>
    %166 = arith.negf %165 : vector<2x32xf32>
    %167 = math.exp %166 : vector<2x32xf32>
    %cst_44 = arith.constant 1.000000e+00 : f32
    %168 = vector.broadcast %cst_44 : f32 to vector<2x32xf32>
    %169 = arith.addf %168, %167 : vector<2x32xf32>
    %170 = arith.divf %168, %169 : vector<2x32xf32>
    %171 = vector.extract_strided_slice %164 {offsets = [0, 32], sizes = [2, 32], strides = [1, 1]} : vector<2x128xf32> to vector<2x32xf32>
    %172 = arith.negf %171 : vector<2x32xf32>
    %173 = math.exp %172 : vector<2x32xf32>
    %cst_45 = arith.constant 1.000000e+00 : f32
    %174 = vector.broadcast %cst_45 : f32 to vector<2x32xf32>
    %175 = arith.addf %174, %173 : vector<2x32xf32>
    %176 = arith.divf %174, %175 : vector<2x32xf32>
    %177 = vector.extract_strided_slice %164 {offsets = [0, 64], sizes = [2, 32], strides = [1, 1]} : vector<2x128xf32> to vector<2x32xf32>
    %178 = math.tanh %177 : vector<2x32xf32>
    %179 = vector.extract_strided_slice %164 {offsets = [0, 96], sizes = [2, 32], strides = [1, 1]} : vector<2x128xf32> to vector<2x32xf32>
    %180 = arith.negf %179 : vector<2x32xf32>
    %181 = math.exp %180 : vector<2x32xf32>
    %cst_46 = arith.constant 1.000000e+00 : f32
    %182 = vector.broadcast %cst_46 : f32 to vector<2x32xf32>
    %183 = arith.addf %182, %181 : vector<2x32xf32>
    %184 = arith.divf %182, %183 : vector<2x32xf32>
    %185 = arith.mulf %176, %157 : vector<2x32xf32>
    %186 = arith.mulf %170, %178 : vector<2x32xf32>
    %187 = arith.addf %185, %186 : vector<2x32xf32>
    %188 = math.tanh %187 : vector<2x32xf32>
    %189 = arith.mulf %184, %188 : vector<2x32xf32>
    %c6_i32 = arith.constant 6 : i32
    %c2_i32_47 = arith.constant 2 : i32
    %190 = arith.muli %c6_i32, %c2_i32_47 : i32
    %191 = arith.index_cast %190 : i32 to index
    %c0_48 = arith.constant 0 : index
    %192 = vector.load %arg5[%191, %c0_48] : memref<16x128xf32, #tpu.memory_space<vmem>>, vector<2x128xf32>
    %cst_49 = arith.constant dense<0.000000e+00> : vector<2x128xf32>
    %193 = tpu.matmul %189, %7, %cst_49 {dimension_numbers = #tpu.dot_dimension_numbers<[1], [0], [0], [1], [0, 0, 1, 1], [], []>} : vector<2x32xf32>, vector<32x128xf32>, vector<2x128xf32> -> vector<2x128xf32>
    %194 = arith.addf %192, %193 : vector<2x128xf32>
    %195 = vector.extract_strided_slice %194 {offsets = [0, 0], sizes = [2, 32], strides = [1, 1]} : vector<2x128xf32> to vector<2x32xf32>
    %196 = arith.negf %195 : vector<2x32xf32>
    %197 = math.exp %196 : vector<2x32xf32>
    %cst_50 = arith.constant 1.000000e+00 : f32
    %198 = vector.broadcast %cst_50 : f32 to vector<2x32xf32>
    %199 = arith.addf %198, %197 : vector<2x32xf32>
    %200 = arith.divf %198, %199 : vector<2x32xf32>
    %201 = vector.extract_strided_slice %194 {offsets = [0, 32], sizes = [2, 32], strides = [1, 1]} : vector<2x128xf32> to vector<2x32xf32>
    %202 = arith.negf %201 : vector<2x32xf32>
    %203 = math.exp %202 : vector<2x32xf32>
    %cst_51 = arith.constant 1.000000e+00 : f32
    %204 = vector.broadcast %cst_51 : f32 to vector<2x32xf32>
    %205 = arith.addf %204, %203 : vector<2x32xf32>
    %206 = arith.divf %204, %205 : vector<2x32xf32>
    %207 = vector.extract_strided_slice %194 {offsets = [0, 64], sizes = [2, 32], strides = [1, 1]} : vector<2x128xf32> to vector<2x32xf32>
    %208 = math.tanh %207 : vector<2x32xf32>
    %209 = vector.extract_strided_slice %194 {offsets = [0, 96], sizes = [2, 32], strides = [1, 1]} : vector<2x128xf32> to vector<2x32xf32>
    %210 = arith.negf %209 : vector<2x32xf32>
    %211 = math.exp %210 : vector<2x32xf32>
    %cst_52 = arith.constant 1.000000e+00 : f32
    %212 = vector.broadcast %cst_52 : f32 to vector<2x32xf32>
    %213 = arith.addf %212, %211 : vector<2x32xf32>
    %214 = arith.divf %212, %213 : vector<2x32xf32>
    %215 = arith.mulf %206, %187 : vector<2x32xf32>
    %216 = arith.mulf %200, %208 : vector<2x32xf32>
    %217 = arith.addf %215, %216 : vector<2x32xf32>
    %218 = math.tanh %217 : vector<2x32xf32>
    %219 = arith.mulf %214, %218 : vector<2x32xf32>
    %c7_i32 = arith.constant 7 : i32
    %c2_i32_53 = arith.constant 2 : i32
    %220 = arith.muli %c7_i32, %c2_i32_53 : i32
    %221 = arith.index_cast %220 : i32 to index
    %c0_54 = arith.constant 0 : index
    %222 = vector.load %arg5[%221, %c0_54] : memref<16x128xf32, #tpu.memory_space<vmem>>, vector<2x128xf32>
    %cst_55 = arith.constant dense<0.000000e+00> : vector<2x128xf32>
    %223 = tpu.matmul %219, %7, %cst_55 {dimension_numbers = #tpu.dot_dimension_numbers<[1], [0], [0], [1], [0, 0, 1, 1], [], []>} : vector<2x32xf32>, vector<32x128xf32>, vector<2x128xf32> -> vector<2x128xf32>
    %224 = arith.addf %222, %223 : vector<2x128xf32>
    %225 = vector.extract_strided_slice %224 {offsets = [0, 0], sizes = [2, 32], strides = [1, 1]} : vector<2x128xf32> to vector<2x32xf32>
    %226 = arith.negf %225 : vector<2x32xf32>
    %227 = math.exp %226 : vector<2x32xf32>
    %cst_56 = arith.constant 1.000000e+00 : f32
    %228 = vector.broadcast %cst_56 : f32 to vector<2x32xf32>
    %229 = arith.addf %228, %227 : vector<2x32xf32>
    %230 = arith.divf %228, %229 : vector<2x32xf32>
    %231 = vector.extract_strided_slice %224 {offsets = [0, 32], sizes = [2, 32], strides = [1, 1]} : vector<2x128xf32> to vector<2x32xf32>
    %232 = arith.negf %231 : vector<2x32xf32>
    %233 = math.exp %232 : vector<2x32xf32>
    %cst_57 = arith.constant 1.000000e+00 : f32
    %234 = vector.broadcast %cst_57 : f32 to vector<2x32xf32>
    %235 = arith.addf %234, %233 : vector<2x32xf32>
    %236 = arith.divf %234, %235 : vector<2x32xf32>
    %237 = vector.extract_strided_slice %224 {offsets = [0, 64], sizes = [2, 32], strides = [1, 1]} : vector<2x128xf32> to vector<2x32xf32>
    %238 = math.tanh %237 : vector<2x32xf32>
    %239 = vector.extract_strided_slice %224 {offsets = [0, 96], sizes = [2, 32], strides = [1, 1]} : vector<2x128xf32> to vector<2x32xf32>
    %240 = arith.negf %239 : vector<2x32xf32>
    %241 = math.exp %240 : vector<2x32xf32>
    %cst_58 = arith.constant 1.000000e+00 : f32
    %242 = vector.broadcast %cst_58 : f32 to vector<2x32xf32>
    %243 = arith.addf %242, %241 : vector<2x32xf32>
    %244 = arith.divf %242, %243 : vector<2x32xf32>
    %245 = arith.mulf %236, %217 : vector<2x32xf32>
    %246 = arith.mulf %230, %238 : vector<2x32xf32>
    %247 = arith.addf %245, %246 : vector<2x32xf32>
    %248 = math.tanh %247 : vector<2x32xf32>
    %249 = arith.mulf %244, %248 : vector<2x32xf32>
    %c8_i32 = arith.constant 8 : i32
    %c0_59 = arith.constant 0 : index
    %c0_60 = arith.constant 0 : index
    %250 = vector.load %arg4[%c0_59, %c0_60] : memref<2x32xf32, #tpu.memory_space<vmem>>, vector<2x32xf32>
    tpu.vector_store %arg4[%c0_59, %c0_60], %249 {strides = array<i32>} : memref<2x32xf32, #tpu.memory_space<vmem>>, vector<2x32xf32>,
    return
  }
}

</mosaic_0001>

<llo_original>
// kernel: tpu_custom_call.1
$region0: #{tpu_custom_call.1}
  #allocation0 [shape = 'u32[]', space=smem, size = 0x4, offset = 0x4, fixed_abs, tag = 'smem constant byte address 0x4 - core index']
  #allocation1 [shape = 'u32[144,128]{1,0:T(1,128)}', space=vmem, size = 0x12000, scoped, tag = 'internal scratch']
  #allocation2 [shape = 'f32[16,128]{1,0:T(8,128)}', space=vmem, size = 0x2000, scoped, tag = 'scratch operand']
  %s0 = inlined_call_operand.hbm [shape: f32[16,32], index: 0, kind: input, shape index: {}]
  %s1 = inlined_call_operand.hbm [shape: f32[32,128], index: 1, kind: input, shape index: {}]
  %s2 = inlined_call_operand.hbm [shape: f32[32,128], index: 2, kind: input, shape index: {}]
  %s3 = inlined_call_operand.vmem [shape: f32[1,128], index: 3, kind: input, shape index: {}]
  %s4 = inlined_call_operand.hbm [shape: f32[2,32], index: 4, kind: output, shape index: {}]
  %s5 = sld [smem:[#allocation0]]
  $region38: #{tpu_custom_call.1} parent=0
    _
  %s7 = ssub.s32 1, %s5
  %s8 = scalar_select 0, %s7, %s5
  $region1: #{tpu_custom_call.1} parent=0
    #allocation3 [shape = 'u8[8192]{0}', space=vmem, size = 0x2000, scoped, tag = 'input window, operand 0, single buffered']
    #allocation4 [shape = 's32[1]{0}', space=sflag, size = 0x4, scoped, tag = 'scoped memory for tpu_custom_call.1']
    #allocation5 [shape = 's32[1]{0}', space=sflag, size = 0x4, scoped, tag = 'scoped memory for tpu_custom_call.1']
    #allocation6 [shape = 'u8[16384]{0}', space=vmem, size = 0x4000, scoped, tag = 'input window, operand 1, single buffered']
    #allocation7 [shape = 's32[1]{0}', space=sflag, size = 0x4, scoped, tag = 'scoped memory for tpu_custom_call.1']
    #allocation8 [shape = 'u8[16384]{0}', space=vmem, size = 0x4000, scoped, tag = 'input window, operand 2, single buffered']
    #allocation9 [shape = 'u8[1024]{0}', space=vmem, size = 0x400, scoped, tag = 'output window, operand 0, single buffered']
    %9 = vsyncpa [#allocation4], 0
    %10 = vsyncpa [#allocation7], 0
    %11 = vsyncpa [#allocation5], 0
    // Predicated region
    $region2: #{tpu_custom_call.1} parent=1 // pred_check
      _
    $region3: #{tpu_custom_call.1} parent=1 // pred_check_branch
      %13 = sbr.rel (0) target = $region5
    $region4: #{tpu_custom_call.1} parent=1 // pred_region
      %s15 = ssub.s32 256, 256
      %16 = vsyncadd [#allocation4], %s15
      %s17 = sshll.u32 [#allocation3], 4
      %s18 = int_to_ptr.vmem [resolvable:$true] %s17
      %23 = dma.hbm_to_vmem [thread:$0]  %s0, 256, %s18, [#allocation4], 128, 128, 8
    $region5: #{tpu_custom_call.1} parent=1 // pred_fallthru
      _
    // Predicated region
    $region6: #{tpu_custom_call.1} parent=1 // pred_check
      _
    $region7: #{tpu_custom_call.1} parent=1 // pred_check_branch
      %25 = sbr.rel (0) target = $region9
    $region8: #{tpu_custom_call.1} parent=1 // pred_region
      %s27 = ssub.s32 512, 512
      %28 = vsyncadd [#allocation7], %s27
      %s29 = sshll.u32 [#allocation6], 4
      %s30 = int_to_ptr.vmem [resolvable:$true] %s29
      %35 = dma.hbm_to_vmem [thread:$0]  %s1, 512, %s30, [#allocation7], 128, 128, 8
    $region9: #{tpu_custom_call.1} parent=1 // pred_fallthru
      _
    // Predicated region
    $region10: #{tpu_custom_call.1} parent=1 // pred_check
      _
    $region11: #{tpu_custom_call.1} parent=1 // pred_check_branch
      %37 = sbr.rel (0) target = $region13
    $region12: #{tpu_custom_call.1} parent=1 // pred_region
      %s39 = ssub.s32 512, 512
      %40 = vsyncadd [#allocation7], %s39
      %s41 = sshll.u32 [#allocation8], 4
      %s42 = int_to_ptr.vmem [resolvable:$true] %s41
      %47 = dma.hbm_to_vmem [thread:$0]  %s2, 512, %s42, [#allocation7], 128, 128, 8
    $region13: #{tpu_custom_call.1} parent=1 // pred_fallthru
      _
    // Predicated region
    $region14: #{tpu_custom_call.1} parent=1 // pred_check
      _
    $region15: #{tpu_custom_call.1} parent=1 // pred_check_branch
      %49 = sbr.rel (0) target = $region17
    $region16: #{tpu_custom_call.1} parent=1 // pred_region
      _
    $region17: #{tpu_custom_call.1} parent=1 // pred_fallthru
      _
    // Predicated region
    $region18: #{tpu_custom_call.1} parent=1 // pred_check
      _
    $region19: #{tpu_custom_call.1} parent=1 // pred_check_branch
      %51 = sbr.rel (0) target = $region21
    $region20: #{tpu_custom_call.1} parent=1 // pred_region
      %52 = dma.done [#allocation4], 256
    $region21: #{tpu_custom_call.1} parent=1 // pred_fallthru
      _
    // Predicated region
    $region22: #{tpu_custom_call.1} parent=1 // pred_check
      _
    $region23: #{tpu_custom_call.1} parent=1 // pred_check_branch
      %54 = sbr.rel (0) target = $region25
    $region24: #{tpu_custom_call.1} parent=1 // pred_region
      %55 = dma.done [#allocation7], 512
    $region25: #{tpu_custom_call.1} parent=1 // pred_fallthru
      _
    // Predicated region
    $region26: #{tpu_custom_call.1} parent=1 // pred_check
      _
    $region27: #{tpu_custom_call.1} parent=1 // pred_check_branch
      %57 = sbr.rel (0) target = $region29
    $region28: #{tpu_custom_call.1} parent=1 // pred_region
      %58 = dma.done [#allocation7], 512
    $region29: #{tpu_custom_call.1} parent=1 // pred_fallthru
      _
    %v59 = vld [vmem:[#allocation3] sm:$0xff]
    %v60 = vld [vmem:[#allocation3 + $0x8] sm:$0xff]
    %v61 = vld [vmem:[#allocation6] sm:$0xff]
    %v62 = vld [vmem:[#allocation6 + $0x8] sm:$0xff]
    %v63 = vld [vmem:[#allocation6 + $0x10] sm:$0xff]
    %v64 = vld [vmem:[#allocation6 + $0x18] sm:$0xff]
    %v65 = vld [vmem:[%s3] sm:$0x1]
    %v67 = vlaneseq
    %v68 = vshrl.u32 %v67, 7
    %v69 = vsub.s32 0, %v68
    %v70 = vrot.slane %v65, %v69
    %vm72 = vcmask 261120
    %v74 = vsel %vm72, %v59, 0
    %v77 = vsel %vm72, %v60, 0
    %79 = vmatprep.subr.mxu0 0.0
    %80 = vmatpush1.msra.mxu0 %v61
    %81 = vmatprep.subr.mxu0 0.0
    %82 = vmatpush1.msra.mxu0 %v62
    %83 = vmatprep.subr.mxu0 0.0
    %84 = vmatpush1.msra.mxu0 %v63
    %85 = vmatprep.subr.mxu0 0.0
    %86 = vmatpush1.msra.mxu0 %v64
    %87 = vmatprep.subr.mxu0 0.0
    %88 = vmatpush1.msra.mxu0 0.0
    %89 = vmatprep.subr.mxu0 0.0
    %90 = vmatpush1.msra.mxu0 0.0
    %91 = vmatprep.subr.mxu0 0.0
    %92 = vmatpush1.msra.mxu0 0.0
    %93 = vmatprep.subr.mxu0 0.0
    %94 = vmatpush1.msra.mxu0 0.0
    %95 = vmatprep.subr.mxu0 0.0
    %96 = vmatpush1.msra.mxu0 0.0
    %97 = vmatprep.subr.mxu0 0.0
    %98 = vmatpush1.msra.mxu0 0.0
    %99 = vmatprep.subr.mxu0 0.0
    %100 = vmatpush1.msra.mxu0 0.0
    %101 = vmatprep.subr.mxu0 0.0
    %102 = vmatpush1.msra.mxu0 0.0
    %103 = vmatprep.subr.mxu0 0.0
    %104 = vmatpush1.msra.mxu0 0.0
    %105 = vmatprep.subr.mxu0 0.0
    %106 = vmatpush1.msra.mxu0 0.0
    %107 = vmatprep.subr.mxu0 0.0
    %108 = vmatpush1.msra.mxu0 0.0
    %109 = vmatprep.subr.mxu0 0.0
    %110 = vmatpush1.msra.mxu0 0.0
    %111 = vmatprep.subr.mxu0 0.0
    %112 = vmatpush1.msra.mxu0 0.0
    %113 = vmatprep.subr.mxu0 0.0
    %114 = vmatpush1.msra.mxu0 0.0
    %115 = vmatprep.subr.mxu0 0.0
    %116 = vmatpush1.msra.mxu0 0.0
    %117 = vmatprep.subr.mxu0 0.0
    %118 = vmatpush1.msra.mxu0 0.0
    %119 = vmatprep.subr.mxu0 0.0
    %120 = vmatpush1.msra.mxu0 0.0
    %121 = vmatprep.subr.mxu0 0.0
    %122 = vmatpush1.msra.mxu0 0.0
    %123 = vmatprep.subr.mxu0 0.0
    %124 = vmatpush1.msra.mxu0 0.0
    %125 = vmatprep.subr.mxu0 0.0
    %126 = vmatpush1.msra.mxu0 0.0
    %127 = vmatprep.subr.mxu0 0.0
    %128 = vmatpush1.msra.mxu0 0.0
    %129 = vmatprep.subr.mxu0 0.0
    %130 = vmatpush1.msra.mxu0 0.0
    %131 = vmatprep.subr.mxu0 0.0
    %132 = vmatpush1.msra.mxu0 0.0
    %133 = vmatprep.subr.mxu0 0.0
    %134 = vmatpush1.msra.mxu0 0.0
    %135 = vmatprep.subr.mxu0 0.0
    %136 = vmatpush1.msra.mxu0 0.0
    %137 = vmatprep.subr.mxu0 0.0
    %138 = vmatpush1.msra.mxu0 0.0
    %139 = vmatprep.subr.mxu0 0.0
    %140 = vmatpush1.msra.mxu0 0.0
    %141 = vmatprep.subr.mxu0 0.0
    %142 = vmatpush1.msra.mxu0 0.0
    %143 = vmatprep.mubr.f32.mxu0 0.0
    %144 = vmatmul.mubr.f32.gmra.mrb[0].mxu0 %v74
    %v145 = vpop.f32.mrb[0].mxu0
    %v146 = vadd.f32 %v70, %v145
    %v147 = vpop.f32.mrb[0].mxu0
    %148 = vmatprep.mubr.f32.mxu0 0.0
    %149 = vmatmul.mubr.f32.gmra.mrb[0].mxu0 %v77
    %v150 = vpop.f32.mrb[0].mxu0
    %v151 = vadd.f32 %v70, %v150
    %v152 = vpop.f32.mrb[0].mxu0
    %153 = vdwg.mxu0
    %154 = vst [vmem:[#allocation2] sm:$0xff] %v146
    %155 = vst [vmem:[#allocation2 + $0x8] sm:$0xff] %v151
    %v156 = vld [vmem:[#allocation8] sm:$0xff]
    %v157 = vld [vmem:[#allocation8 + $0x8] sm:$0xff]
    %v158 = vld [vmem:[#allocation8 + $0x10] sm:$0xff]
    %v159 = vld [vmem:[#allocation8 + $0x18] sm:$0xff]
    %v160 = vld [vmem:[#allocation2] sm:$0x3]
    %v162 = vsel %vm72, 0.0, 0
    %164 = vmatprep.subr.mxu0 0.0
    %165 = vmatpush1.msra.mxu0 %v156
    %166 = vmatprep.subr.mxu0 0.0
    %167 = vmatpush1.msra.mxu0 %v157
    %168 = vmatprep.subr.mxu0 0.0
    %169 = vmatpush1.msra.mxu0 %v158
    %170 = vmatprep.subr.mxu0 0.0
    %171 = vmatpush1.msra.mxu0 %v159
    %172 = vmatprep.subr.mxu0 0.0
    %173 = vmatpush1.msra.mxu0 0.0
    %174 = vmatprep.subr.mxu0 0.0
    %175 = vmatpush1.msra.mxu0 0.0
    %176 = vmatprep.subr.mxu0 0.0
    %177 = vmatpush1.msra.mxu0 0.0
    %178 = vmatprep.subr.mxu0 0.0
    %179 = vmatpush1.msra.mxu0 0.0
    %180 = vmatprep.subr.mxu0 0.0
    %181 = vmatpush1.msra.mxu0 0.0
    %182 = vmatprep.subr.mxu0 0.0
    %183 = vmatpush1.msra.mxu0 0.0
    %184 = vmatprep.subr.mxu0 0.0
    %185 = vmatpush1.msra.mxu0 0.0
    %186 = vmatprep.subr.mxu0 0.0
    %187 = vmatpush1.msra.mxu0 0.0
    %188 = vmatprep.subr.mxu0 0.0
    %189 = vmatpush1.msra.mxu0 0.0
    %190 = vmatprep.subr.mxu0 0.0
    %191 = vmatpush1.msra.mxu0 0.0
    %192 = vmatprep.subr.mxu0 0.0
    %193 = vmatpush1.msra.mxu0 0.0
    %194 = vmatprep.subr.mxu0 0.0
    %195 = vmatpush1.msra.mxu0 0.0
    %196 = vmatprep.subr.mxu0 0.0
    %197 = vmatpush1.msra.mxu0 0.0
    %198 = vmatprep.subr.mxu0 0.0
    %199 = vmatpush1.msra.mxu0 0.0
    %200 = vmatprep.subr.mxu0 0.0
    %201 = vmatpush1.msra.mxu0 0.0
    %202 = vmatprep.subr.mxu0 0.0
    %203 = vmatpush1.msra.mxu0 0.0
    %204 = vmatprep.subr.mxu0 0.0
    %205 = vmatpush1.msra.mxu0 0.0
    %206 = vmatprep.subr.mxu0 0.0
    %207 = vmatpush1.msra.mxu0 0.0
    %208 = vmatprep.subr.mxu0 0.0
    %209 = vmatpush1.msra.mxu0 0.0
    %210 = vmatprep.subr.mxu0 0.0
    %211 = vmatpush1.msra.mxu0 0.0
    %212 = vmatprep.subr.mxu0 0.0
    %213 = vmatpush1.msra.mxu0 0.0
    %214 = vmatprep.subr.mxu0 0.0
    %215 = vmatpush1.msra.mxu0 0.0
    %216 = vmatprep.subr.mxu0 0.0
    %217 = vmatpush1.msra.mxu0 0.0
    %218 = vmatprep.subr.mxu0 0.0
    %219 = vmatpush1.msra.mxu0 0.0
    %220 = vmatprep.subr.mxu0 0.0
    %221 = vmatpush1.msra.mxu0 0.0
    %222 = vmatprep.subr.mxu0 0.0
    %223 = vmatpush1.msra.mxu0 0.0
    %224 = vmatprep.subr.mxu0 0.0
    %225 = vmatpush1.msra.mxu0 0.0
    %226 = vmatprep.subr.mxu0 0.0
    %227 = vmatpush1.msra.mxu0 0.0
    %228 = vmatprep.mubr.f32.mxu0 0.0
    %229 = vmatmul.mubr.f32.gmra.mrb[0].mxu0 %v162
    %v230 = vpop.f32.mrb[0].mxu0
    %v231 = vadd.f32 0.0, %v230
    %v232 = vpop.f32.mrb[0].mxu0
    %233 = vdwg.mxu0
    %v234 = vadd.f32 %v160, %v231
    %v235 = vxor.u32 %v234, 2147483648
    %v236 = vmul.f32 %v235, 1.442695
    %v237 = vpow.pop %v236
    %v238 = vadd.f32 %v237, 1.0
    %v239 = vrcp.pop %v238
    %v240 = vmul.f32 1.0, %v239
    %v241 = vtanh.pop %v234
    %v242 = vmul.f32 %v240, 0.0
    %244 = vrot.lane.b32.xlu0 %v241, 64
    %v245 = vpop.permute.xlu0 %244
    %v247 = vmul.f32 %v240, %v245
    %249 = vrot.lane.b32.xlu0 %v247, 32
    %v250 = vpop.permute.xlu0 %249
    %v252 = vadd.f32 %v242, %v250
    %v253 = vtanh.pop %v252
    %255 = vrot.lane.b32.xlu0 %v253, 64
    %v256 = vpop.permute.xlu0 %255
    %v258 = vmul.f32 %v240, %v256
    %v259 = vld [vmem:[#allocation2 + $0x2] sm:$0x3]
    %261 = vrot.lane.b32.xlu0 %v258, 32
    %v262 = vpop.permute.xlu0 %261
    %v263 = vsel %vm72, %v262, 0
    %265 = vmatprep.subr.mxu0 0.0
    %266 = vmatpush1.msra.mxu0 %v156
    %267 = vmatprep.subr.mxu0 0.0
    %268 = vmatpush1.msra.mxu0 %v157
    %269 = vmatprep.subr.mxu0 0.0
    %270 = vmatpush1.msra.mxu0 %v158
    %271 = vmatprep.subr.mxu0 0.0
    %272 = vmatpush1.msra.mxu0 %v159
    %273 = vmatprep.subr.mxu0 0.0
    %274 = vmatpush1.msra.mxu0 0.0
    %275 = vmatprep.subr.mxu0 0.0
    %276 = vmatpush1.msra.mxu0 0.0
    %277 = vmatprep.subr.mxu0 0.0
    %278 = vmatpush1.msra.mxu0 0.0
    %279 = vmatprep.subr.mxu0 0.0
    %280 = vmatpush1.msra.mxu0 0.0
    %281 = vmatprep.subr.mxu0 0.0
    %282 = vmatpush1.msra.mxu0 0.0
    %283 = vmatprep.subr.mxu0 0.0
    %284 = vmatpush1.msra.mxu0 0.0
    %285 = vmatprep.subr.mxu0 0.0
    %286 = vmatpush1.msra.mxu0 0.0
    %287 = vmatprep.subr.mxu0 0.0
    %288 = vmatpush1.msra.mxu0 0.0
    %289 = vmatprep.subr.mxu0 0.0
    %290 = vmatpush1.msra.mxu0 0.0
    %291 = vmatprep.subr.mxu0 0.0
    %292 = vmatpush1.msra.mxu0 0.0
    %293 = vmatprep.subr.mxu0 0.0
    %294 = vmatpush1.msra.mxu0 0.0
    %295 = vmatprep.subr.mxu0 0.0
    %296 = vmatpush1.msra.mxu0 0.0
    %297 = vmatprep.subr.mxu0 0.0
    %298 = vmatpush1.msra.mxu0 0.0
    %299 = vmatprep.subr.mxu0 0.0
    %300 = vmatpush1.msra.mxu0 0.0
    %301 = vmatprep.subr.mxu0 0.0
    %302 = vmatpush1.msra.mxu0 0.0
    %303 = vmatprep.subr.mxu0 0.0
    %304 = vmatpush1.msra.mxu0 0.0
    %305 = vmatprep.subr.mxu0 0.0
    %306 = vmatpush1.msra.mxu0 0.0
    %307 = vmatprep.subr.mxu0 0.0
    %308 = vmatpush1.msra.mxu0 0.0
    %309 = vmatprep.subr.mxu0 0.0
    %310 = vmatpush1.msra.mxu0 0.0
    %311 = vmatprep.subr.mxu0 0.0
    %312 = vmatpush1.msra.mxu0 0.0
    %313 = vmatprep.subr.mxu0 0.0
    %314 = vmatpush1.msra.mxu0 0.0
    %315 = vmatprep.subr.mxu0 0.0
    %316 = vmatpush1.msra.mxu0 0.0
    %317 = vmatprep.subr.mxu0 0.0
    %318 = vmatpush1.msra.mxu0 0.0
    %319 = vmatprep.subr.mxu0 0.0
    %320 = vmatpush1.msra.mxu0 0.0
    %321 = vmatprep.subr.mxu0 0.0
    %322 = vmatpush1.msra.mxu0 0.0
    %323 = vmatprep.subr.mxu0 0.0
    %324 = vmatpush1.msra.mxu0 0.0
    %325 = vmatprep.subr.mxu0 0.0
    %326 = vmatpush1.msra.mxu0 0.0
    %327 = vmatprep.subr.mxu0 0.0
    %328 = vmatpush1.msra.mxu0 0.0
    %329 = vmatprep.mubr.f32.mxu0 0.0
    %330 = vmatmul.mubr.f32.gmra.mrb[0].mxu0 %v263
    %v331 = vpop.f32.mrb[0].mxu0
    %v332 = vadd.f32 0.0, %v331
    %v333 = vpop.f32.mrb[0].mxu0
    %334 = vdwg.mxu0
    %v335 = vadd.f32 %v259, %v332
    %v336 = vxor.u32 %v335, 2147483648
    %v337 = vmul.f32 %v336, 1.442695
    %v338 = vpow.pop %v337
    %v339 = vadd.f32 %v338, 1.0
    %v340 = vrcp.pop %v339
    %v341 = vmul.f32 1.0, %v340
    %v342 = vtanh.pop %v335
    %v343 = vmul.f32 %v341, %v252
    %345 = vrot.lane.b32.xlu0 %v342, 64
    %v346 = vpop.permute.xlu0 %345
    %v348 = vmul.f32 %v341, %v346
    %350 = vrot.lane.b32.xlu0 %v348, 32
    %v351 = vpop.permute.xlu0 %350
    %v353 = vadd.f32 %v343, %v351
    %v354 = vtanh.pop %v353
    %356 = vrot.lane.b32.xlu0 %v354, 64
    %v357 = vpop.permute.xlu0 %356
    %v359 = vmul.f32 %v341, %v357
    %v360 = vld [vmem:[#allocation2 + $0x4] sm:$0x3]
    %362 = vrot.lane.b32.xlu0 %v359, 32
    %v363 = vpop.permute.xlu0 %362
    %v364 = vsel %vm72, %v363, 0
    %366 = vmatprep.subr.mxu0 0.0
    %367 = vmatpush1.msra.mxu0 %v156
    %368 = vmatprep.subr.mxu0 0.0
    %369 = vmatpush1.msra.mxu0 %v157
    %370 = vmatprep.subr.mxu0 0.0
    %371 = vmatpush1.msra.mxu0 %v158
    %372 = vmatprep.subr.mxu0 0.0
    %373 = vmatpush1.msra.mxu0 %v159
    %374 = vmatprep.subr.mxu0 0.0
    %375 = vmatpush1.msra.mxu0 0.0
    %376 = vmatprep.subr.mxu0 0.0
    %377 = vmatpush1.msra.mxu0 0.0
    %378 = vmatprep.subr.mxu0 0.0
    %379 = vmatpush1.msra.mxu0 0.0
    %380 = vmatprep.subr.mxu0 0.0
    %381 = vmatpush1.msra.mxu0 0.0
    %382 = vmatprep.subr.mxu0 0.0
    %383 = vmatpush1.msra.mxu0 0.0
    %384 = vmatprep.subr.mxu0 0.0
    %385 = vmatpush1.msra.mxu0 0.0
    %386 = vmatprep.subr.mxu0 0.0
    %387 = vmatpush1.msra.mxu0 0.0
    %388 = vmatprep.subr.mxu0 0.0
    %389 = vmatpush1.msra.mxu0 0.0
    %390 = vmatprep.subr.mxu0 0.0
    %391 = vmatpush1.msra.mxu0 0.0
    %392 = vmatprep.subr.mxu0 0.0
    %393 = vmatpush1.msra.mxu0 0.0
    %394 = vmatprep.subr.mxu0 0.0
    %395 = vmatpush1.msra.mxu0 0.0
    %396 = vmatprep.subr.mxu0 0.0
    %397 = vmatpush1.msra.mxu0 0.0
    %398 = vmatprep.subr.mxu0 0.0
    %399 = vmatpush1.msra.mxu0 0.0
    %400 = vmatprep.subr.mxu0 0.0
    %401 = vmatpush1.msra.mxu0 0.0
    %402 = vmatprep.subr.mxu0 0.0
    %403 = vmatpush1.msra.mxu0 0.0
    %404 = vmatprep.subr.mxu0 0.0
    %405 = vmatpush1.msra.mxu0 0.0
    %406 = vmatprep.subr.mxu0 0.0
    %407 = vmatpush1.msra.mxu0 0.0
    %408 = vmatprep.subr.mxu0 0.0
    %409 = vmatpush1.msra.mxu0 0.0
    %410 = vmatprep.subr.mxu0 0.0
    %411 = vmatpush1.msra.mxu0 0.0
    %412 = vmatprep.subr.mxu0 0.0
    %413 = vmatpush1.msra.mxu0 0.0
    %414 = vmatprep.subr.mxu0 0.0
    %415 = vmatpush1.msra.mxu0 0.0
    %416 = vmatprep.subr.mxu0 0.0
    %417 = vmatpush1.msra.mxu0 0.0
    %418 = vmatprep.subr.mxu0 0.0
    %419 = vmatpush1.msra.mxu0 0.0
    %420 = vmatprep.subr.mxu0 0.0
    %421 = vmatpush1.msra.mxu0 0.0
    %422 = vmatprep.subr.mxu0 0.0
    %423 = vmatpush1.msra.mxu0 0.0
    %424 = vmatprep.subr.mxu0 0.0
    %425 = vmatpush1.msra.mxu0 0.0
    %426 = vmatprep.subr.mxu0 0.0
    %427 = vmatpush1.msra.mxu0 0.0
    %428 = vmatprep.subr.mxu0 0.0
    %429 = vmatpush1.msra.mxu0 0.0
    %430 = vmatprep.mubr.f32.mxu0 0.0
    %431 = vmatmul.mubr.f32.gmra.mrb[0].mxu0 %v364
    %v432 = vpop.f32.mrb[0].mxu0
    %v433 = vadd.f32 0.0, %v432
    %v434 = vpop.f32.mrb[0].mxu0
    %435 = vdwg.mxu0
    %v436 = vadd.f32 %v360, %v433
    %v437 = vxor.u32 %v436, 2147483648
    %v438 = vmul.f32 %v437, 1.442695
    %v439 = vpow.pop %v438
    %v440 = vadd.f32 %v439, 1.0
    %v441 = vrcp.pop %v440
    %v442 = vmul.f32 1.0, %v441
    %v443 = vtanh.pop %v436
    %v444 = vmul.f32 %v442, %v353
    %446 = vrot.lane.b32.xlu0 %v443, 64
    %v447 = vpop.permute.xlu0 %446
    %v449 = vmul.f32 %v442, %v447
    %451 = vrot.lane.b32.xlu0 %v449, 32
    %v452 = vpop.permute.xlu0 %451
    %v454 = vadd.f32 %v444, %v452
    %v455 = vtanh.pop %v454
    %457 = vrot.lane.b32.xlu0 %v455, 64
    %v458 = vpop.permute.xlu0 %457
    %v460 = vmul.f32 %v442, %v458
    %v461 = vld [vmem:[#allocation2 + $0x6] sm:$0x3]
    %463 = vrot.lane.b32.xlu0 %v460, 32
    %v464 = vpop.permute.xlu0 %463
    %v465 = vsel %vm72, %v464, 0
    %467 = vmatprep.subr.mxu0 0.0
    %468 = vmatpush1.msra.mxu0 %v156
    %469 = vmatprep.subr.mxu0 0.0
    %470 = vmatpush1.msra.mxu0 %v157
    %471 = vmatprep.subr.mxu0 0.0
    %472 = vmatpush1.msra.mxu0 %v158
    %473 = vmatprep.subr.mxu0 0.0
    %474 = vmatpush1.msra.mxu0 %v159
    %475 = vmatprep.subr.mxu0 0.0
    %476 = vmatpush1.msra.mxu0 0.0
    %477 = vmatprep.subr.mxu0 0.0
    %478 = vmatpush1.msra.mxu0 0.0
    %479 = vmatprep.subr.mxu0 0.0
    %480 = vmatpush1.msra.mxu0 0.0
    %481 = vmatprep.subr.mxu0 0.0
    %482 = vmatpush1.msra.mxu0 0.0
    %483 = vmatprep.subr.mxu0 0.0
    %484 = vmatpush1.msra.mxu0 0.0
    %485 = vmatprep.subr.mxu0 0.0
    %486 = vmatpush1.msra.mxu0 0.0
    %487 = vmatprep.subr.mxu0 0.0
    %488 = vmatpush1.msra.mxu0 0.0
    %489 = vmatprep.subr.mxu0 0.0
    %490 = vmatpush1.msra.mxu0 0.0
    %491 = vmatprep.subr.mxu0 0.0
    %492 = vmatpush1.msra.mxu0 0.0
    %493 = vmatprep.subr.mxu0 0.0
    %494 = vmatpush1.msra.mxu0 0.0
    %495 = vmatprep.subr.mxu0 0.0
    %496 = vmatpush1.msra.mxu0 0.0
    %497 = vmatprep.subr.mxu0 0.0
    %498 = vmatpush1.msra.mxu0 0.0
    %499 = vmatprep.subr.mxu0 0.0
    %500 = vmatpush1.msra.mxu0 0.0
    %501 = vmatprep.subr.mxu0 0.0
    %502 = vmatpush1.msra.mxu0 0.0
    %503 = vmatprep.subr.mxu0 0.0
    %504 = vmatpush1.msra.mxu0 0.0
    %505 = vmatprep.subr.mxu0 0.0
    %506 = vmatpush1.msra.mxu0 0.0
    %507 = vmatprep.subr.mxu0 0.0
    %508 = vmatpush1.msra.mxu0 0.0
    %509 = vmatprep.subr.mxu0 0.0
    %510 = vmatpush1.msra.mxu0 0.0
    %511 = vmatprep.subr.mxu0 0.0
    %512 = vmatpush1.msra.mxu0 0.0
    %513 = vmatprep.subr.mxu0 0.0
    %514 = vmatpush1.msra.mxu0 0.0
    %515 = vmatprep.subr.mxu0 0.0
    %516 = vmatpush1.msra.mxu0 0.0
    %517 = vmatprep.subr.mxu0 0.0
    %518 = vmatpush1.msra.mxu0 0.0
    %519 = vmatprep.subr.mxu0 0.0
    %520 = vmatpush1.msra.mxu0 0.0
    %521 = vmatprep.subr.mxu0 0.0
    %522 = vmatpush1.msra.mxu0 0.0
    %523 = vmatprep.subr.mxu0 0.0
    %524 = vmatpush1.msra.mxu0 0.0
    %525 = vmatprep.subr.mxu0 0.0
    %526 = vmatpush1.msra.mxu0 0.0
    %527 = vmatprep.subr.mxu0 0.0
    %528 = vmatpush1.msra.mxu0 0.0
    %529 = vmatprep.subr.mxu0 0.0
    %530 = vmatpush1.msra.mxu0 0.0
    %531 = vmatprep.mubr.f32.mxu0 0.0
    %532 = vmatmul.mubr.f32.gmra.mrb[0].mxu0 %v465
    %v533 = vpop.f32.mrb[0].mxu0
    %v534 = vadd.f32 0.0, %v533
    %v535 = vpop.f32.mrb[0].mxu0
    %536 = vdwg.mxu0
    %v537 = vadd.f32 %v461, %v534
    %v538 = vxor.u32 %v537, 2147483648
    %v539 = vmul.f32 %v538, 1.442695
    %v540 = vpow.pop %v539
    %v541 = vadd.f32 %v540, 1.0
    %v542 = vrcp.pop %v541
    %v543 = vmul.f32 1.0, %v542
    %v544 = vtanh.pop %v537
    %v545 = vmul.f32 %v543, %v454
    %547 = vrot.lane.b32.xlu0 %v544, 64
    %v548 = vpop.permute.xlu0 %547
    %v550 = vmul.f32 %v543, %v548
    %552 = vrot.lane.b32.xlu0 %v550, 32
    %v553 = vpop.permute.xlu0 %552
    %v555 = vadd.f32 %v545, %v553
    %v556 = vtanh.pop %v555
    %558 = vrot.lane.b32.xlu0 %v556, 64
    %v559 = vpop.permute.xlu0 %558
    %v561 = vmul.f32 %v543, %v559
    %v562 = vld [vmem:[#allocation2 + $0x8] sm:$0x3]
    %564 = vrot.lane.b32.xlu0 %v561, 32
    %v565 = vpop.permute.xlu0 %564
    %v566 = vsel %vm72, %v565, 0
    %568 = vmatprep.subr.mxu0 0.0
    %569 = vmatpush1.msra.mxu0 %v156
    %570 = vmatprep.subr.mxu0 0.0
    %571 = vmatpush1.msra.mxu0 %v157
    %572 = vmatprep.subr.mxu0 0.0
    %573 = vmatpush1.msra.mxu0 %v158
    %574 = vmatprep.subr.mxu0 0.0
    %575 = vmatpush1.msra.mxu0 %v159
    %576 = vmatprep.subr.mxu0 0.0
    %577 = vmatpush1.msra.mxu0 0.0
    %578 = vmatprep.subr.mxu0 0.0
    %579 = vmatpush1.msra.mxu0 0.0
    %580 = vmatprep.subr.mxu0 0.0
    %581 = vmatpush1.msra.mxu0 0.0
    %582 = vmatprep.subr.mxu0 0.0
    %583 = vmatpush1.msra.mxu0 0.0
    %584 = vmatprep.subr.mxu0 0.0
    %585 = vmatpush1.msra.mxu0 0.0
    %586 = vmatprep.subr.mxu0 0.0
    %587 = vmatpush1.msra.mxu0 0.0
    %588 = vmatprep.subr.mxu0 0.0
    %589 = vmatpush1.msra.mxu0 0.0
    %590 = vmatprep.subr.mxu0 0.0
    %591 = vmatpush1.msra.mxu0 0.0
    %592 = vmatprep.subr.mxu0 0.0
    %593 = vmatpush1.msra.mxu0 0.0
    %594 = vmatprep.subr.mxu0 0.0
    %595 = vmatpush1.msra.mxu0 0.0
    %596 = vmatprep.subr.mxu0 0.0
    %597 = vmatpush1.msra.mxu0 0.0
    %598 = vmatprep.subr.mxu0 0.0
    %599 = vmatpush1.msra.mxu0 0.0
    %600 = vmatprep.subr.mxu0 0.0
    %601 = vmatpush1.msra.mxu0 0.0
    %602 = vmatprep.subr.mxu0 0.0
    %603 = vmatpush1.msra.mxu0 0.0
    %604 = vmatprep.subr.mxu0 0.0
    %605 = vmatpush1.msra.mxu0 0.0
    %606 = vmatprep.subr.mxu0 0.0
    %607 = vmatpush1.msra.mxu0 0.0
    %608 = vmatprep.subr.mxu0 0.0
    %609 = vmatpush1.msra.mxu0 0.0
    %610 = vmatprep.subr.mxu0 0.0
    %611 = vmatpush1.msra.mxu0 0.0
    %612 = vmatprep.subr.mxu0 0.0
    %613 = vmatpush1.msra.mxu0 0.0
    %614 = vmatprep.subr.mxu0 0.0
    %615 = vmatpush1.msra.mxu0 0.0
    %616 = vmatprep.subr.mxu0 0.0
    %617 = vmatpush1.msra.mxu0 0.0
    %618 = vmatprep.subr.mxu0 0.0
    %619 = vmatpush1.msra.mxu0 0.0
    %620 = vmatprep.subr.mxu0 0.0
    %621 = vmatpush1.msra.mxu0 0.0
    %622 = vmatprep.subr.mxu0 0.0
    %623 = vmatpush1.msra.mxu0 0.0
    %624 = vmatprep.subr.mxu0 0.0
    %625 = vmatpush1.msra.mxu0 0.0
    %626 = vmatprep.subr.mxu0 0.0
    %627 = vmatpush1.msra.mxu0 0.0
    %628 = vmatprep.subr.mxu0 0.0
    %629 = vmatpush1.msra.mxu0 0.0
    %630 = vmatprep.subr.mxu0 0.0
    %631 = vmatpush1.msra.mxu0 0.0
    %632 = vmatprep.mubr.f32.mxu0 0.0
    %633 = vmatmul.mubr.f32.gmra.mrb[0].mxu0 %v566
    %v634 = vpop.f32.mrb[0].mxu0
    %v635 = vadd.f32 0.0, %v634
    %v636 = vpop.f32.mrb[0].mxu0
    %637 = vdwg.mxu0
    %v638 = vadd.f32 %v562, %v635
    %v639 = vxor.u32 %v638, 2147483648
    %v640 = vmul.f32 %v639, 1.442695
    %v641 = vpow.pop %v640
    %v642 = vadd.f32 %v641, 1.0
    %v643 = vrcp.pop %v642
    %v644 = vmul.f32 1.0, %v643
    %v645 = vtanh.pop %v638
    %v646 = vmul.f32 %v644, %v555
    %648 = vrot.lane.b32.xlu0 %v645, 64
    %v649 = vpop.permute.xlu0 %648
    %v651 = vmul.f32 %v644, %v649
    %653 = vrot.lane.b32.xlu0 %v651, 32
    %v654 = vpop.permute.xlu0 %653
    %v656 = vadd.f32 %v646, %v654
    %v657 = vtanh.pop %v656
    %659 = vrot.lane.b32.xlu0 %v657, 64
    %v660 = vpop.permute.xlu0 %659
    %v662 = vmul.f32 %v644, %v660
    %v663 = vld [vmem:[#allocation2 + $0xa] sm:$0x3]
    %665 = vrot.lane.b32.xlu0 %v662, 32
    %v666 = vpop.permute.xlu0 %665
    %v667 = vsel %vm72, %v666, 0
    %669 = vmatprep.subr.mxu0 0.0
    %670 = vmatpush1.msra.mxu0 %v156
    %671 = vmatprep.subr.mxu0 0.0
    %672 = vmatpush1.msra.mxu0 %v157
    %673 = vmatprep.subr.mxu0 0.0
    %674 = vmatpush1.msra.mxu0 %v158
    %675 = vmatprep.subr.mxu0 0.0
    %676 = vmatpush1.msra.mxu0 %v159
    %677 = vmatprep.subr.mxu0 0.0
    %678 = vmatpush1.msra.mxu0 0.0
    %679 = vmatprep.subr.mxu0 0.0
    %680 = vmatpush1.msra.mxu0 0.0
    %681 = vmatprep.subr.mxu0 0.0
    %682 = vmatpush1.msra.mxu0 0.0
    %683 = vmatprep.subr.mxu0 0.0
    %684 = vmatpush1.msra.mxu0 0.0
    %685 = vmatprep.subr.mxu0 0.0
    %686 = vmatpush1.msra.mxu0 0.0
    %687 = vmatprep.subr.mxu0 0.0
    %688 = vmatpush1.msra.mxu0 0.0
    %689 = vmatprep.subr.mxu0 0.0
    %690 = vmatpush1.msra.mxu0 0.0
    %691 = vmatprep.subr.mxu0 0.0
    %692 = vmatpush1.msra.mxu0 0.0
    %693 = vmatprep.subr.mxu0 0.0
    %694 = vmatpush1.msra.mxu0 0.0
    %695 = vmatprep.subr.mxu0 0.0
    %696 = vmatpush1.msra.mxu0 0.0
    %697 = vmatprep.subr.mxu0 0.0
    %698 = vmatpush1.msra.mxu0 0.0
    %699 = vmatprep.subr.mxu0 0.0
    %700 = vmatpush1.msra.mxu0 0.0
    %701 = vmatprep.subr.mxu0 0.0
    %702 = vmatpush1.msra.mxu0 0.0
    %703 = vmatprep.subr.mxu0 0.0
    %704 = vmatpush1.msra.mxu0 0.0
    %705 = vmatprep.subr.mxu0 0.0
    %706 = vmatpush1.msra.mxu0 0.0
    %707 = vmatprep.subr.mxu0 0.0
    %708 = vmatpush1.msra.mxu0 0.0
    %709 = vmatprep.subr.mxu0 0.0
    %710 = vmatpush1.msra.mxu0 0.0
    %711 = vmatprep.subr.mxu0 0.0
    %712 = vmatpush1.msra.mxu0 0.0
    %713 = vmatprep.subr.mxu0 0.0
    %714 = vmatpush1.msra.mxu0 0.0
    %715 = vmatprep.subr.mxu0 0.0
    %716 = vmatpush1.msra.mxu0 0.0
    %717 = vmatprep.subr.mxu0 0.0
    %718 = vmatpush1.msra.mxu0 0.0
    %719 = vmatprep.subr.mxu0 0.0
    %720 = vmatpush1.msra.mxu0 0.0
    %721 = vmatprep.subr.mxu0 0.0
    %722 = vmatpush1.msra.mxu0 0.0
    %723 = vmatprep.subr.mxu0 0.0
    %724 = vmatpush1.msra.mxu0 0.0
    %725 = vmatprep.subr.mxu0 0.0
    %726 = vmatpush1.msra.mxu0 0.0
    %727 = vmatprep.subr.mxu0 0.0
    %728 = vmatpush1.msra.mxu0 0.0
    %729 = vmatprep.subr.mxu0 0.0
    %730 = vmatpush1.msra.mxu0 0.0
    %731 = vmatprep.subr.mxu0 0.0
    %732 = vmatpush1.msra.mxu0 0.0
    %733 = vmatprep.mubr.f32.mxu0 0.0
    %734 = vmatmul.mubr.f32.gmra.mrb[0].mxu0 %v667
    %v735 = vpop.f32.mrb[0].mxu0
    %v736 = vadd.f32 0.0, %v735
    %v737 = vpop.f32.mrb[0].mxu0
    %738 = vdwg.mxu0
    %v739 = vadd.f32 %v663, %v736
    %v740 = vxor.u32 %v739, 2147483648
    %v741 = vmul.f32 %v740, 1.442695
    %v742 = vpow.pop %v741
    %v743 = vadd.f32 %v742, 1.0
    %v744 = vrcp.pop %v743
    %v745 = vmul.f32 1.0, %v744
    %v746 = vtanh.pop %v739
    %v747 = vmul.f32 %v745, %v656
    %749 = vrot.lane.b32.xlu0 %v746, 64
    %v750 = vpop.permute.xlu0 %749
    %v752 = vmul.f32 %v745, %v750
    %754 = vrot.lane.b32.xlu0 %v752, 32
    %v755 = vpop.permute.xlu0 %754
    %v757 = vadd.f32 %v747, %v755
    %v758 = vtanh.pop %v757
    %760 = vrot.lane.b32.xlu0 %v758, 64
    %v761 = vpop.permute.xlu0 %760
    %v763 = vmul.f32 %v745, %v761
    %v764 = vld [vmem:[#allocation2 + $0xc] sm:$0x3]
    %766 = vrot.lane.b32.xlu0 %v763, 32
    %v767 = vpop.permute.xlu0 %766
    %v768 = vsel %vm72, %v767, 0
    %770 = vmatprep.subr.mxu0 0.0
    %771 = vmatpush1.msra.mxu0 %v156
    %772 = vmatprep.subr.mxu0 0.0
    %773 = vmatpush1.msra.mxu0 %v157
    %774 = vmatprep.subr.mxu0 0.0
    %775 = vmatpush1.msra.mxu0 %v158
    %776 = vmatprep.subr.mxu0 0.0
    %777 = vmatpush1.msra.mxu0 %v159
    %778 = vmatprep.subr.mxu0 0.0
    %779 = vmatpush1.msra.mxu0 0.0
    %780 = vmatprep.subr.mxu0 0.0
    %781 = vmatpush1.msra.mxu0 0.0
    %782 = vmatprep.subr.mxu0 0.0
    %783 = vmatpush1.msra.mxu0 0.0
    %784 = vmatprep.subr.mxu0 0.0
    %785 = vmatpush1.msra.mxu0 0.0
    %786 = vmatprep.subr.mxu0 0.0
    %787 = vmatpush1.msra.mxu0 0.0
    %788 = vmatprep.subr.mxu0 0.0
    %789 = vmatpush1.msra.mxu0 0.0
    %790 = vmatprep.subr.mxu0 0.0
    %791 = vmatpush1.msra.mxu0 0.0
    %792 = vmatprep.subr.mxu0 0.0
    %793 = vmatpush1.msra.mxu0 0.0
    %794 = vmatprep.subr.mxu0 0.0
    %795 = vmatpush1.msra.mxu0 0.0
    %796 = vmatprep.subr.mxu0 0.0
    %797 = vmatpush1.msra.mxu0 0.0
    %798 = vmatprep.subr.mxu0 0.0
    %799 = vmatpush1.msra.mxu0 0.0
    %800 = vmatprep.subr.mxu0 0.0
    %801 = vmatpush1.msra.mxu0 0.0
    %802 = vmatprep.subr.mxu0 0.0
    %803 = vmatpush1.msra.mxu0 0.0
    %804 = vmatprep.subr.mxu0 0.0
    %805 = vmatpush1.msra.mxu0 0.0
    %806 = vmatprep.subr.mxu0 0.0
    %807 = vmatpush1.msra.mxu0 0.0
    %808 = vmatprep.subr.mxu0 0.0
    %809 = vmatpush1.msra.mxu0 0.0
    %810 = vmatprep.subr.mxu0 0.0
    %811 = vmatpush1.msra.mxu0 0.0
    %812 = vmatprep.subr.mxu0 0.0
    %813 = vmatpush1.msra.mxu0 0.0
    %814 = vmatprep.subr.mxu0 0.0
    %815 = vmatpush1.msra.mxu0 0.0
    %816 = vmatprep.subr.mxu0 0.0
    %817 = vmatpush1.msra.mxu0 0.0
    %818 = vmatprep.subr.mxu0 0.0
    %819 = vmatpush1.msra.mxu0 0.0
    %820 = vmatprep.subr.mxu0 0.0
    %821 = vmatpush1.msra.mxu0 0.0
    %822 = vmatprep.subr.mxu0 0.0
    %823 = vmatpush1.msra.mxu0 0.0
    %824 = vmatprep.subr.mxu0 0.0
    %825 = vmatpush1.msra.mxu0 0.0
    %826 = vmatprep.subr.mxu0 0.0
    %827 = vmatpush1.msra.mxu0 0.0
    %828 = vmatprep.subr.mxu0 0.0
    %829 = vmatpush1.msra.mxu0 0.0
    %830 = vmatprep.subr.mxu0 0.0
    %831 = vmatpush1.msra.mxu0 0.0
    %832 = vmatprep.subr.mxu0 0.0
    %833 = vmatpush1.msra.mxu0 0.0
    %834 = vmatprep.mubr.f32.mxu0 0.0
    %835 = vmatmul.mubr.f32.gmra.mrb[0].mxu0 %v768
    %v836 = vpop.f32.mrb[0].mxu0
    %v837 = vadd.f32 0.0, %v836
    %v838 = vpop.f32.mrb[0].mxu0
    %839 = vdwg.mxu0
    %v840 = vadd.f32 %v764, %v837
    %v841 = vxor.u32 %v840, 2147483648
    %v842 = vmul.f32 %v841, 1.442695
    %v843 = vpow.pop %v842
    %v844 = vadd.f32 %v843, 1.0
    %v845 = vrcp.pop %v844
    %v846 = vmul.f32 1.0, %v845
    %v847 = vtanh.pop %v840
    %v848 = vmul.f32 %v846, %v757
    %850 = vrot.lane.b32.xlu0 %v847, 64
    %v851 = vpop.permute.xlu0 %850
    %v853 = vmul.f32 %v846, %v851
    %855 = vrot.lane.b32.xlu0 %v853, 32
    %v856 = vpop.permute.xlu0 %855
    %v858 = vadd.f32 %v848, %v856
    %v859 = vtanh.pop %v858
    %861 = vrot.lane.b32.xlu0 %v859, 64
    %v862 = vpop.permute.xlu0 %861
    %v864 = vmul.f32 %v846, %v862
    %v865 = vld [vmem:[#allocation2 + $0xe] sm:$0x3]
    %867 = vrot.lane.b32.xlu0 %v864, 32
    %v868 = vpop.permute.xlu0 %867
    %v869 = vsel %vm72, %v868, 0
    %871 = vmatprep.subr.mxu0 0.0
    %872 = vmatpush1.msra.mxu0 %v156
    %873 = vmatprep.subr.mxu0 0.0
    %874 = vmatpush1.msra.mxu0 %v157
    %875 = vmatprep.subr.mxu0 0.0
    %876 = vmatpush1.msra.mxu0 %v158
    %877 = vmatprep.subr.mxu0 0.0
    %878 = vmatpush1.msra.mxu0 %v159
    %879 = vmatprep.subr.mxu0 0.0
    %880 = vmatpush1.msra.mxu0 0.0
    %881 = vmatprep.subr.mxu0 0.0
    %882 = vmatpush1.msra.mxu0 0.0
    %883 = vmatprep.subr.mxu0 0.0
    %884 = vmatpush1.msra.mxu0 0.0
    %885 = vmatprep.subr.mxu0 0.0
    %886 = vmatpush1.msra.mxu0 0.0
    %887 = vmatprep.subr.mxu0 0.0
    %888 = vmatpush1.msra.mxu0 0.0
    %889 = vmatprep.subr.mxu0 0.0
    %890 = vmatpush1.msra.mxu0 0.0
    %891 = vmatprep.subr.mxu0 0.0
    %892 = vmatpush1.msra.mxu0 0.0
    %893 = vmatprep.subr.mxu0 0.0
    %894 = vmatpush1.msra.mxu0 0.0
    %895 = vmatprep.subr.mxu0 0.0
    %896 = vmatpush1.msra.mxu0 0.0
    %897 = vmatprep.subr.mxu0 0.0
    %898 = vmatpush1.msra.mxu0 0.0
    %899 = vmatprep.subr.mxu0 0.0
    %900 = vmatpush1.msra.mxu0 0.0
    %901 = vmatprep.subr.mxu0 0.0
    %902 = vmatpush1.msra.mxu0 0.0
    %903 = vmatprep.subr.mxu0 0.0
    %904 = vmatpush1.msra.mxu0 0.0
    %905 = vmatprep.subr.mxu0 0.0
    %906 = vmatpush1.msra.mxu0 0.0
    %907 = vmatprep.subr.mxu0 0.0
    %908 = vmatpush1.msra.mxu0 0.0
    %909 = vmatprep.subr.mxu0 0.0
    %910 = vmatpush1.msra.mxu0 0.0
    %911 = vmatprep.subr.mxu0 0.0
    %912 = vmatpush1.msra.mxu0 0.0
    %913 = vmatprep.subr.mxu0 0.0
    %914 = vmatpush1.msra.mxu0 0.0
    %915 = vmatprep.subr.mxu0 0.0
    %916 = vmatpush1.msra.mxu0 0.0
    %917 = vmatprep.subr.mxu0 0.0
    %918 = vmatpush1.msra.mxu0 0.0
    %919 = vmatprep.subr.mxu0 0.0
    %920 = vmatpush1.msra.mxu0 0.0
    %921 = vmatprep.subr.mxu0 0.0
    %922 = vmatpush1.msra.mxu0 0.0
    %923 = vmatprep.subr.mxu0 0.0
    %924 = vmatpush1.msra.mxu0 0.0
    %925 = vmatprep.subr.mxu0 0.0
    %926 = vmatpush1.msra.mxu0 0.0
    %927 = vmatprep.subr.mxu0 0.0
    %928 = vmatpush1.msra.mxu0 0.0
    %929 = vmatprep.subr.mxu0 0.0
    %930 = vmatpush1.msra.mxu0 0.0
    %931 = vmatprep.subr.mxu0 0.0
    %932 = vmatpush1.msra.mxu0 0.0
    %933 = vmatprep.subr.mxu0 0.0
    %934 = vmatpush1.msra.mxu0 0.0
    %935 = vmatprep.mubr.f32.mxu0 0.0
    %936 = vmatmul.mubr.f32.gmra.mrb[0].mxu0 %v869
    %v937 = vpop.f32.mrb[0].mxu0
    %v938 = vadd.f32 0.0, %v937
    %v939 = vpop.f32.mrb[0].mxu0
    %940 = vdwg.mxu0
    %v941 = vadd.f32 %v865, %v938
    %v942 = vxor.u32 %v941, 2147483648
    %v943 = vmul.f32 %v942, 1.442695
    %v944 = vpow.pop %v943
    %v945 = vadd.f32 %v944, 1.0
    %v946 = vrcp.pop %v945
    %v947 = vmul.f32 1.0, %v946
    %v948 = vtanh.pop %v941
    %v949 = vmul.f32 %v947, %v858
    %951 = vrot.lane.b32.xlu0 %v948, 64
    %v952 = vpop.permute.xlu0 %951
    %v954 = vmul.f32 %v947, %v952
    %956 = vrot.lane.b32.xlu0 %v954, 32
    %v957 = vpop.permute.xlu0 %956
    %v959 = vadd.f32 %v949, %v957
    %v960 = vtanh.pop %v959
    %962 = vrot.lane.b32.xlu0 %v960, 64
    %v963 = vpop.permute.xlu0 %962
    %v965 = vmul.f32 %v947, %v963
    %967 = vrot.lane.b32.xlu0 %v965, 32
    %v968 = vpop.permute.xlu0 %967
    %vm970 = vcmask 254976
    %971 = vst.msk [vmem:[#allocation9] sm:$0x3] %vm970, %v968
    // Predicated region
    $region30: #{tpu_custom_call.1} parent=1 // pred_check
      _
    $region31: #{tpu_custom_call.1} parent=1 // pred_check_branch
      %973 = sbr.rel (0) target = $region33
    $region32: #{tpu_custom_call.1} parent=1 // pred_region
      %s975 = ssub.s32 32, 32
      %976 = vsyncadd [#allocation5], %s975
      %s978 = sshll.u32 [#allocation9], 4
      %s979 = int_to_ptr.vmem [resolvable:$true] %s978
      %981 = dma.vmem_to_hbm [thread:$0]  %s979, 32, %s4, [#allocation5]
    $region33: #{tpu_custom_call.1} parent=1 // pred_fallthru
      _
    // Predicated region
    $region34: #{tpu_custom_call.1} parent=1 // pred_check
      _
    $region35: #{tpu_custom_call.1} parent=1 // pred_check_branch
      %983 = sbr.rel (0) target = $region37
    $region36: #{tpu_custom_call.1} parent=1 // pred_region
      %984 = dma.done [#allocation5], 32
    $region37: #{tpu_custom_call.1} parent=1 // pred_fallthru
      _
    %985 = vsyncpa [#allocation4], 1
    %986 = vsyncpa [#allocation7], 1
    %987 = vsyncpa [#allocation5], 1

</llo_original>
